<compile_context>
chip_gen: v7x
topology: tpu7x:2x2x1
jax: 0.10.0
libtpu: 0.0.40
codegen_flags: <defaults>
</compile_context>

<pallas_src>
import functools

import numpy as np
import jax
import jax.numpy as jnp
from jax.experimental import pallas as pl
from jax.experimental.pallas import tpu as pltpu

SIZES = (1, 3, 6, 8)
_LANE = 128
_HARD_TB_CAP = 4096          # per review: raise from 1024
_MIN_TILES = 4               # >= 2 B-tiles per TensorCore on 2-TC parts (v7x)
_HEADROOM = 4 * 1024 * 1024  # compiler scratch / misc headroom
_K_TILE_THRESHOLD = 8 * 1024 * 1024   # K-tile once P exceeds this


# ----------------------------------------------------------------------------
# Pooling-matrix construction (host-side, cached per (h, w, sizes)).
# ----------------------------------------------------------------------------
def _adaptive_pool_matrix(in_size: int, out_size: int) -> np.ndarray:
    """Row i averages input positions [floor(i*I/O), ceil((i+1)*I/O))."""
    m = np.zeros((out_size, in_size), dtype=np.float32)
    for i in range(out_size):
        start = (i * in_size) // out_size
        end = -(-((i + 1) * in_size) // out_size)  # ceil div
        m[i, start:end] = 1.0 / float(end - start)
    return m


@functools.lru_cache(maxsize=None)
def _psp_matrix(h: int, w: int, sizes: tuple) -> np.ndarray:
    """Fused pooling matrix, shape (h*w, pad128(sum s*s)), f32."""
    rows = []
    for s in sizes:
        ph = _adaptive_pool_matrix(h, s)          # (s, h)
        pw = _adaptive_pool_matrix(w, s)          # (s, w)
        # kron(ph, pw)[i*s + j, h'*w + w'] = ph[i, h'] * pw[j, w']
        rows.append(np.kron(ph, pw))              # (s*s, h*w)
    p = np.concatenate(rows, axis=0)              # (total, h*w), total = 110
    total = p.shape[0]
    n_pad = ((total + _LANE - 1) // _LANE) * _LANE
    p_pad = np.zeros((n_pad, h * w), dtype=np.float32)
    p_pad[:total] = p
    return np.ascontiguousarray(p_pad.T)          # (h*w, n_pad)


# ----------------------------------------------------------------------------
# Tile-size selection.
# ----------------------------------------------------------------------------
def _round_up(x: int, m: int) -> int:
    return -(-x // m) * m


def _sublane(dsize: int) -> int:
    # 8 sublanes per f32 vreg; packed dtypes want 16 (bf16) / 32 (int8) rows.
    return max(8, 32 // dsize)


def _vmem_limit_bytes() -> int:
    """Per-generation scoped-VMEM limit: ~48 MiB on v7x, 64 MiB on v5e/v6e."""
    cap = 64 * 1024 * 1024
    try:
        cap = int(getattr(pltpu.get_tpu_info(), "vmem_capacity_bytes", cap))
    except Exception:
        pass
    return min((cap * 3) // 4, 64 * 1024 * 1024)


def _choose_tb_mono(b: int, hw: int, n_pad: int, dsize: int, vmem_limit: int) -> int:
    """B tile for the monolithic-K path. Accounts for the resident P matrix."""
    sub = _sublane(dsize)
    p_bytes = hw * n_pad * 4                       # P is f32, single-buffered
    per_row = 2 * (hw + n_pad) * dsize             # double-buffered x + out tiles
    budget = vmem_limit - _HEADROOM - p_bytes
    tb = max(sub, budget // per_row)
    tb = min(tb, _HARD_TB_CAP, _round_up(-(-b // _MIN_TILES), sub))
    if tb >= b:
        return b                                   # full extent is always legal
    return max(sub, (tb // sub) * sub)


def _pick_tk(hw: int) -> int:
    """Largest MXU-friendly K chunk that divides hw exactly (0 if none)."""
    for tk in (4096, 2048, 1024, 512, 256, 128):
        if hw % tk == 0:
            return tk
    return 0


def _choose_tb_ktiled(b: int, hw: int, n_pad: int, dsize: int,
                      vmem_limit: int, tk: int) -> int:
    """B tile for the K-tiled path."""
    sub = _sublane(dsize)
    p_tile = 2 * tk * n_pad * 4                    # double-buffered f32 P chunks
    per_row = 2 * tk * dsize + 2 * n_pad * dsize + n_pad * 4   # x, out, f32 acc
    budget = vmem_limit - _HEADROOM - p_tile
    tb = max(sub, budget // per_row)
    tb = min(tb, _HARD_TB_CAP, _round_up(-(-b // _MIN_TILES), sub))
    if tb >= b:
        return b
    return max(sub, (tb // sub) * sub)


# ----------------------------------------------------------------------------
# Kernels.
# ----------------------------------------------------------------------------
def _psp_kernel(x_ref, p_ref, o_ref):
    # x_ref: (TB, H*W)   p_ref: (H*W, 128) f32   o_ref: (TB, 128)
    # NOTE: on the final (partial) B tile, rows past b hold undefined data;
    # this is safe only because the store to o_ref is masked to in-range rows.
    # Do not turn this into a read-modify-write of o_ref.
    o_ref[...] = jnp.dot(
        x_ref[...], p_ref[...], preferred_element_type=jnp.float32
    ).astype(o_ref.dtype)


def _psp_kernel_ktiled(x_ref, p_ref, o_ref, acc_ref):
    # x_ref: (TB, TK)   p_ref: (TK, 128) f32   o_ref: (TB, 128)   acc: (TB,128) f32
    k = pl.program_id(1)

    @pl.when(k == 0)
    def _():
        acc_ref[...] = jnp.zeros_like(acc_ref)

    acc_ref[...] += jnp.dot(
        x_ref[...], p_ref[...], preferred_element_type=jnp.float32
    )

    @pl.when(k == pl.num_programs(1) - 1)
    def _():
        o_ref[...] = acc_ref[...].astype(o_ref.dtype)


# ----------------------------------------------------------------------------
# pallas_call wrappers.
# ----------------------------------------------------------------------------
def _psp_pallas(x: jax.Array, p: jax.Array, tb: int, tk, vmem_limit: int) -> jax.Array:
    """x: (b, hw), p: (hw, n_pad) f32.  Returns (b, n_pad) in x.dtype."""
    b, hw = x.shape
    n_pad = p.shape[1]
    dsize = jnp.dtype(x.dtype).itemsize
    cost = pl.CostEstimate(
        flops=2 * b * hw * n_pad,
        transcendentals=0,
        bytes_accessed=b * hw * dsize + b * n_pad * dsize + hw * n_pad * 4,
    )

    if tk is None:
        return pl.pallas_call(
            _psp_kernel,
            out_shape=jax.ShapeDtypeStruct((b, n_pad), x.dtype),
            grid_spec=pltpu.PrefetchScalarGridSpec(
                num_scalar_prefetch=0,
                grid=(pl.cdiv(b, tb),),
                in_specs=[
                    # pipelined x tiles
                    pl.BlockSpec((tb, hw), lambda i: (i, 0)),
                    # P is revisited every step: single-buffer it (DMA'd once)
                    pl.BlockSpec((hw, n_pad), lambda i: (0, 0),
                                 pipeline_mode=pl.Buffered(1)),
                ],
                out_specs=pl.BlockSpec((tb, n_pad), lambda i: (i, 0)),
            ),
            compiler_params=pltpu.CompilerParams(
                dimension_semantics=("parallel",),   # shard B tiles across TCs
                vmem_limit_bytes=vmem_limit,
            ),
            cost_estimate=cost,
        )(x, p)

    # K-tiled accumulator path (reduction axis last, "arbitrary").
    assert hw % tk == 0
    return pl.pallas_call(
        _psp_kernel_ktiled,
        out_shape=jax.ShapeDtypeStruct((b, n_pad), x.dtype),
        grid_spec=pltpu.PrefetchScalarGridSpec(
            num_scalar_prefetch=0,
            grid=(pl.cdiv(b, tb), hw // tk),
            in_specs=[
                pl.BlockSpec((tb, tk), lambda i, k: (i, k)),
                pl.BlockSpec((tk, n_pad), lambda i, k: (k, 0)),
            ],
            out_specs=pl.BlockSpec((tb, n_pad), lambda i, k: (i, 0)),
            scratch_shapes=[pltpu.VMEM((tb, n_pad), jnp.float32)],
        ),
        compiler_params=pltpu.CompilerParams(
            dimension_semantics=("parallel", "arbitrary"),
            vmem_limit_bytes=vmem_limit,
        ),
        cost_estimate=cost,
    )(x, p)


def psp_module(feats: jax.Array, sizes=SIZES, keep_padding: bool = False) -> jax.Array:
    """JAX/Pallas equivalent of PSPModule.forward (dimension=2).

    keep_padding=False returns (n, c, sum(s*s)) exactly like the PyTorch module.
    keep_padding=True returns the lane-dense (n, c, 128) layout (extra columns
    are exact zeros) so downstream matmul/concat consumers can skip the slice.
    """
    n, c, h, w = feats.shape
    b, hw = n * c, h * w
    total = sum(s * s for s in sizes)             # 110 for (1,3,6,8)
    dsize = jnp.dtype(feats.dtype).itemsize

    p_np = _psp_matrix(h, w, tuple(sizes))        # (hw, n_pad) f32, cached
    n_pad = p_np.shape[1]
    # Keep P in f32 for accuracy; the kernel is memory-bound so the
    # mixed-precision dot for bf16 inputs costs nothing extra.
    p = jnp.asarray(p_np)

    x = feats.reshape(b, hw)                      # free for contiguous NCHW
    vmem_limit = _vmem_limit_bytes()

    tk = None
    if hw * n_pad * 4 > _K_TILE_THRESHOLD:
        cand = _pick_tk(hw)
        if cand:
            tk = cand
        # TODO(synk): huge hw that is not a multiple of 128 falls back to the
        # monolithic path; zero-padding the K axis would cover that corner.

    if tk is None:
        tb = _choose_tb_mono(b, hw, n_pad, dsize, vmem_limit)
    else:
        tb = _choose_tb_ktiled(b, hw, n_pad, dsize, vmem_limit, tk)

    out = _psp_pallas(x, p, tb, tk, vmem_limit)

    if keep_padding:
        return out.reshape(n, c, n_pad)
    return out[:, :total].reshape(n, c, total)


# ----------------------------------------------------------------------------
# Reference + test.
# ----------------------------------------------------------------------------
def _reference_psp(feats: np.ndarray, sizes=SIZES) -> np.ndarray:
    """Pure-numpy reference of torch AdaptiveAvgPool2d + flatten + concat."""
    n, c, h, w = feats.shape
    outs = []
    for s in sizes:
        pooled = np.zeros((n, c, s, s), dtype=np.float32)
        for i in range(s):
            hs, he = (i * h) // s, -(-((i + 1) * h) // s)
            for j in range(s):
                ws, we = (j * w) // s, -(-((j + 1) * w) // s)
                pooled[:, :, i, j] = feats[:, :, hs:he, ws:we].mean(axis=(2, 3))
        outs.append(pooled.reshape(n, c, s * s))
    return np.concatenate(outs, axis=-1)


if __name__ == "__main__":
    key = jax.random.PRNGKey(0)
    n, c, h, w = 2, 4, 16, 16
    feats = jax.random.normal(key, (n, c, h, w), dtype=jnp.float32)
    total = sum(s * s for s in SIZES)             # 110

    ref = _reference_psp(np.asarray(feats))

    # 1) Default path (monolithic K, matches PyTorch output shape).
    out = jax.block_until_ready(psp_module(feats))
    assert out.shape == (n, c, total), out.shape
    np.testing.assert_allclose(np.asarray(out), ref, rtol=1e-5, atol=1e-5)

    # 2) Padded-output fast path (no post-kernel slice copy).
    out_pad = jax.block_until_ready(psp_module(feats, keep_padding=True))
    assert out_pad.shape == (n, c, _LANE), out_pad.shape
    np.testing.assert_allclose(np.asarray(out_pad)[..., :total], ref,
                               rtol=1e-5, atol=1e-5)
    np.testing.assert_allclose(np.asarray(out_pad)[..., total:], 0.0)

    # 3) Exercise the K-tiled accumulator path (tk=128 over hw=256).
    p = jnp.asarray(_psp_matrix(h, w, SIZES))
    x2d = feats.reshape(n * c, h * w)
    out_k = jax.block_until_ready(
        _psp_pallas(x2d, p, tb=n * c, tk=128, vmem_limit=_vmem_limit_bytes()))
    np.testing.assert_allclose(
        np.asarray(out_k)[:, :total].reshape(n, c, total), ref,
        rtol=1e-5, atol=1e-5)

    print("KERNEL_OK")
</pallas_src>

<mosaic_0001>
module attributes {stable_mosaic.version = 11 : i64} {
  func.func @_psp_kernel(%arg0: i32, %arg1: memref<8x256xf32, #tpu.memory_space<vmem>>, %arg2: memref<256x128xf32, #tpu.memory_space<vmem>>, %arg3: memref<8x128xf32, #tpu.memory_space<vmem>>) attributes {dimension_semantics = [#tpu.dimension_semantics<parallel>], iteration_bounds = array<i64: 1>, scalar_prefetch = 0 : i64, scratch_operands = 0 : i64, tpu.core_type = #tpu.core_type<tc>, window_params = [{transform_indices = @transform_0, window_bounds = array<i64: 8, 256>}, {pipeline_mode = #tpu.pipeline_mode<synchronous>, transform_indices = @transform_1, window_bounds = array<i64: 256, 128>}, {transform_indices = @transform_2, window_bounds = array<i64: 8, 128>}]} {
    %c0 = arith.constant 0 : index
    %c0_0 = arith.constant 0 : index
    %0 = vector.load %arg1[%c0, %c0_0] : memref<8x256xf32, #tpu.memory_space<vmem>>, vector<8x256xf32>
    %c0_1 = arith.constant 0 : index
    %c0_2 = arith.constant 0 : index
    %1 = vector.load %arg2[%c0_1, %c0_2] : memref<256x128xf32, #tpu.memory_space<vmem>>, vector<256x128xf32>
    %cst = arith.constant dense<0.000000e+00> : vector<8x128xf32>
    %2 = tpu.matmul %0, %1, %cst {dimension_numbers = #tpu.dot_dimension_numbers<[1], [0], [0], [1], [0, 0, 1, 1], [], []>} : vector<8x256xf32>, vector<256x128xf32>, vector<8x128xf32> -> vector<8x128xf32>
    %c0_3 = arith.constant 0 : index
    %c0_4 = arith.constant 0 : index
    %3 = vector.load %arg3[%c0_3, %c0_4] : memref<8x128xf32, #tpu.memory_space<vmem>>, vector<8x128xf32>
    tpu.vector_store %arg3[%c0_3, %c0_4], %2 {strides = array<i32>} : memref<8x128xf32, #tpu.memory_space<vmem>>, vector<8x128xf32>,
    return
  }
  func.func @transform_0(%arg0: i32) -> (i32, i32) {
    %c0_i32 = arith.constant 0 : i32
    %c0_i32_0 = arith.constant 0 : i32
    return %arg0, %c0_i32 : i32, i32
  }
  func.func @transform_1(%arg0: i32) -> (i32, i32) {
    %c0_i32 = arith.constant 0 : i32
    %c0_i32_0 = arith.constant 0 : i32
    %c0_i32_1 = arith.constant 0 : i32
    return %c0_i32, %c0_i32_0 : i32, i32
  }
  func.func @transform_2(%arg0: i32) -> (i32, i32) {
    %c0_i32 = arith.constant 0 : i32
    %c0_i32_0 = arith.constant 0 : i32
    return %arg0, %c0_i32 : i32, i32
  }
}

</mosaic_0001>

<llo_original>
// kernel: tpu_custom_call.1
$region0: #{tpu_custom_call.1}
  #allocation0 [shape = 'u32[]', space=smem, size = 0x4, offset = 0x4, fixed_abs, tag = 'smem constant byte address 0x4 - core index']
  #allocation1 [shape = 'u32[144,128]{1,0:T(1,128)}', space=vmem, size = 0x12000, scoped, tag = 'internal scratch']
  %s0 = inlined_call_operand.hbm [shape: f32[8,256], index: 0, kind: input, shape index: {}]
  %s1 = inlined_call_operand.hbm [shape: f32[256,128], index: 1, kind: input, shape index: {}]
  %s2 = inlined_call_operand.hbm [shape: f32[8,128], index: 2, kind: output, shape index: {}]
  %s3 = sld [smem:[#allocation0]]
  $region26: #{tpu_custom_call.1} parent=0
    _
  %s5 = ssub.s32 1, %s3
  %s6 = scalar_select 0, %s5, %s3
  $region1: #{tpu_custom_call.1} parent=0
    #allocation2 [shape = 'u8[8192]{0}', space=vmem, size = 0x2000, scoped, tag = 'input window, operand 0, single buffered']
    #allocation3 [shape = 's32[1]{0}', space=sflag, size = 0x4, scoped, tag = 'scoped memory for tpu_custom_call.1']
    #allocation4 [shape = 's32[1]{0}', space=sflag, size = 0x4, scoped, tag = 'scoped memory for tpu_custom_call.1']
    #allocation5 [shape = 'u8[131072]{0}', space=vmem, size = 0x20000, scoped, tag = 'input window, operand 1, single buffered']
    #allocation6 [shape = 's32[1]{0}', space=sflag, size = 0x4, scoped, tag = 'scoped memory for tpu_custom_call.1']
    #allocation7 [shape = 'u8[4096]{0}', space=vmem, size = 0x1000, scoped, tag = 'output window, operand 0, single buffered']
    %7 = vsyncpa [#allocation3], 0
    %8 = vsyncpa [#allocation6], 0
    %9 = vsyncpa [#allocation4], 0
    // Predicated region
    $region2: #{tpu_custom_call.1} parent=1 // pred_check
      _
    $region3: #{tpu_custom_call.1} parent=1 // pred_check_branch
      %11 = sbr.rel (0) target = $region5
    $region4: #{tpu_custom_call.1} parent=1 // pred_region
      %s13 = ssub.s32 256, 256
      %14 = vsyncadd [#allocation3], %s13
      %s16 = sshll.u32 [#allocation2], 4
      %s17 = int_to_ptr.vmem [resolvable:$true] %s16
      %19 = dma.hbm_to_vmem [thread:$0]  %s0, 256, %s17, [#allocation3]
    $region5: #{tpu_custom_call.1} parent=1 // pred_fallthru
      _
    // Predicated region
    $region6: #{tpu_custom_call.1} parent=1 // pred_check
      _
    $region7: #{tpu_custom_call.1} parent=1 // pred_check_branch
      %21 = sbr.rel (0) target = $region9
    $region8: #{tpu_custom_call.1} parent=1 // pred_region
      %s23 = ssub.s32 4096, 4096
      %24 = vsyncadd [#allocation6], %s23
      %s25 = sshll.u32 [#allocation5], 4
      %s26 = int_to_ptr.vmem [resolvable:$true] %s25
      %31 = dma.hbm_to_vmem [thread:$0]  %s1, 4096, %s26, [#allocation6], 128, 128, 8
    $region9: #{tpu_custom_call.1} parent=1 // pred_fallthru
      _
    // Predicated region
    $region10: #{tpu_custom_call.1} parent=1 // pred_check
      _
    $region11: #{tpu_custom_call.1} parent=1 // pred_check_branch
      %33 = sbr.rel (0) target = $region13
    $region12: #{tpu_custom_call.1} parent=1 // pred_region
      %34 = dma.done [#allocation3], 256
    $region13: #{tpu_custom_call.1} parent=1 // pred_fallthru
      _
    // Predicated region
    $region14: #{tpu_custom_call.1} parent=1 // pred_check
      _
    $region15: #{tpu_custom_call.1} parent=1 // pred_check_branch
      %36 = sbr.rel (0) target = $region17
    $region16: #{tpu_custom_call.1} parent=1 // pred_region
      %37 = dma.done [#allocation6], 4096
    $region17: #{tpu_custom_call.1} parent=1 // pred_fallthru
      _
    %v38 = vld [vmem:[#allocation2] sm:$0xff]
    %v39 = vld [vmem:[#allocation2 + $0x8] sm:$0xff]
    %v40 = vld [vmem:[#allocation5] sm:$0xff]
    %v41 = vld [vmem:[#allocation5 + $0x8] sm:$0xff]
    %v42 = vld [vmem:[#allocation5 + $0x10] sm:$0xff]
    %v43 = vld [vmem:[#allocation5 + $0x18] sm:$0xff]
    %v44 = vld [vmem:[#allocation5 + $0x20] sm:$0xff]
    %v45 = vld [vmem:[#allocation5 + $0x28] sm:$0xff]
    %v46 = vld [vmem:[#allocation5 + $0x30] sm:$0xff]
    %v47 = vld [vmem:[#allocation5 + $0x38] sm:$0xff]
    %v48 = vld [vmem:[#allocation5 + $0x40] sm:$0xff]
    %v49 = vld [vmem:[#allocation5 + $0x48] sm:$0xff]
    %v50 = vld [vmem:[#allocation5 + $0x50] sm:$0xff]
    %v51 = vld [vmem:[#allocation5 + $0x58] sm:$0xff]
    %v52 = vld [vmem:[#allocation5 + $0x60] sm:$0xff]
    %v53 = vld [vmem:[#allocation5 + $0x68] sm:$0xff]
    %v54 = vld [vmem:[#allocation5 + $0x70] sm:$0xff]
    %v55 = vld [vmem:[#allocation5 + $0x78] sm:$0xff]
    %v56 = vld [vmem:[#allocation5 + $0x80] sm:$0xff]
    %v57 = vld [vmem:[#allocation5 + $0x88] sm:$0xff]
    %v58 = vld [vmem:[#allocation5 + $0x90] sm:$0xff]
    %v59 = vld [vmem:[#allocation5 + $0x98] sm:$0xff]
    %v60 = vld [vmem:[#allocation5 + $0xa0] sm:$0xff]
    %v61 = vld [vmem:[#allocation5 + $0xa8] sm:$0xff]
    %v62 = vld [vmem:[#allocation5 + $0xb0] sm:$0xff]
    %v63 = vld [vmem:[#allocation5 + $0xb8] sm:$0xff]
    %v64 = vld [vmem:[#allocation5 + $0xc0] sm:$0xff]
    %v65 = vld [vmem:[#allocation5 + $0xc8] sm:$0xff]
    %v66 = vld [vmem:[#allocation5 + $0xd0] sm:$0xff]
    %v67 = vld [vmem:[#allocation5 + $0xd8] sm:$0xff]
    %v68 = vld [vmem:[#allocation5 + $0xe0] sm:$0xff]
    %v69 = vld [vmem:[#allocation5 + $0xe8] sm:$0xff]
    %v70 = vld [vmem:[#allocation5 + $0xf0] sm:$0xff]
    %v71 = vld [vmem:[#allocation5 + $0xf8] sm:$0xff]
    %72 = vmatprep.subr.mxu0 0.0
    %73 = vmatpush1.msra.mxu0 %v40
    %74 = vmatprep.subr.mxu0 0.0
    %75 = vmatpush1.msra.mxu0 %v41
    %76 = vmatprep.subr.mxu0 0.0
    %77 = vmatpush1.msra.mxu0 %v42
    %78 = vmatprep.subr.mxu0 0.0
    %79 = vmatpush1.msra.mxu0 %v43
    %80 = vmatprep.subr.mxu0 0.0
    %81 = vmatpush1.msra.mxu0 %v44
    %82 = vmatprep.subr.mxu0 0.0
    %83 = vmatpush1.msra.mxu0 %v45
    %84 = vmatprep.subr.mxu0 0.0
    %85 = vmatpush1.msra.mxu0 %v46
    %86 = vmatprep.subr.mxu0 0.0
    %87 = vmatpush1.msra.mxu0 %v47
    %88 = vmatprep.subr.mxu0 0.0
    %89 = vmatpush1.msra.mxu0 %v48
    %90 = vmatprep.subr.mxu0 0.0
    %91 = vmatpush1.msra.mxu0 %v49
    %92 = vmatprep.subr.mxu0 0.0
    %93 = vmatpush1.msra.mxu0 %v50
    %94 = vmatprep.subr.mxu0 0.0
    %95 = vmatpush1.msra.mxu0 %v51
    %96 = vmatprep.subr.mxu0 0.0
    %97 = vmatpush1.msra.mxu0 %v52
    %98 = vmatprep.subr.mxu0 0.0
    %99 = vmatpush1.msra.mxu0 %v53
    %100 = vmatprep.subr.mxu0 0.0
    %101 = vmatpush1.msra.mxu0 %v54
    %102 = vmatprep.subr.mxu0 0.0
    %103 = vmatpush1.msra.mxu0 %v55
    %104 = vmatprep.subr.mxu0 0.0
    %105 = vmatpush1.msra.mxu0 %v56
    %106 = vmatprep.subr.mxu0 0.0
    %107 = vmatpush1.msra.mxu0 %v57
    %108 = vmatprep.subr.mxu0 0.0
    %109 = vmatpush1.msra.mxu0 %v58
    %110 = vmatprep.subr.mxu0 0.0
    %111 = vmatpush1.msra.mxu0 %v59
    %112 = vmatprep.subr.mxu0 0.0
    %113 = vmatpush1.msra.mxu0 %v60
    %114 = vmatprep.subr.mxu0 0.0
    %115 = vmatpush1.msra.mxu0 %v61
    %116 = vmatprep.subr.mxu0 0.0
    %117 = vmatpush1.msra.mxu0 %v62
    %118 = vmatprep.subr.mxu0 0.0
    %119 = vmatpush1.msra.mxu0 %v63
    %120 = vmatprep.subr.mxu0 0.0
    %121 = vmatpush1.msra.mxu0 %v64
    %122 = vmatprep.subr.mxu0 0.0
    %123 = vmatpush1.msra.mxu0 %v65
    %124 = vmatprep.subr.mxu0 0.0
    %125 = vmatpush1.msra.mxu0 %v66
    %126 = vmatprep.subr.mxu0 0.0
    %127 = vmatpush1.msra.mxu0 %v67
    %128 = vmatprep.subr.mxu0 0.0
    %129 = vmatpush1.msra.mxu0 %v68
    %130 = vmatprep.subr.mxu0 0.0
    %131 = vmatpush1.msra.mxu0 %v69
    %132 = vmatprep.subr.mxu0 0.0
    %133 = vmatpush1.msra.mxu0 %v70
    %134 = vmatprep.subr.mxu0 0.0
    %135 = vmatpush1.msra.mxu0 %v71
    %136 = vmatprep.mubr.f32.mxu0 %v39
    %137 = vmatmul.mubr.f32.gmra.mrb[0].mxu0 %v38
    %v138 = vpop.f32.mrb[0].mxu0
    %v139 = vadd.f32 0.0, %v138
    %v140 = vpop.f32.mrb[0].mxu0
    %141 = vdwg.mxu0
    %142 = vst [vmem:[#allocation7] sm:$0xff] %v139
    // Predicated region
    $region18: #{tpu_custom_call.1} parent=1 // pred_check
      _
    $region19: #{tpu_custom_call.1} parent=1 // pred_check_branch
      %144 = sbr.rel (0) target = $region21
    $region20: #{tpu_custom_call.1} parent=1 // pred_region
      %s146 = ssub.s32 128, 128
      %147 = vsyncadd [#allocation4], %s146
      %s149 = sshll.u32 [#allocation7], 4
      %s150 = int_to_ptr.vmem [resolvable:$true] %s149
      %152 = dma.vmem_to_hbm [thread:$0]  %s150, 128, %s2, [#allocation4]
    $region21: #{tpu_custom_call.1} parent=1 // pred_fallthru
      _
    // Predicated region
    $region22: #{tpu_custom_call.1} parent=1 // pred_check
      _
    $region23: #{tpu_custom_call.1} parent=1 // pred_check_branch
      %154 = sbr.rel (0) target = $region25
    $region24: #{tpu_custom_call.1} parent=1 // pred_region
      %155 = dma.done [#allocation4], 128
    $region25: #{tpu_custom_call.1} parent=1 // pred_fallthru
      _
    %156 = vsyncpa [#allocation3], 1
    %157 = vsyncpa [#allocation6], 1
    %158 = vsyncpa [#allocation4], 1

</llo_original>
